<compile_context>
chip_gen: v7x
topology: tpu7x:2x2x1
jax: 0.10.0
libtpu: 0.0.40
codegen_flags: <defaults>
</compile_context>

<pallas_src>
import numpy as np
import jax
import jax.numpy as jnp
from jax import lax
from jax.experimental import pallas as pl
from jax.experimental.pallas import tpu as pltpu

N_CONST = 5.0  # self.n in the torch module


def _round_up(x, m):
    return ((x + m - 1) // m) * m


def _auto_act_dtype(mm_dtype):
    """bf16 tanh on v6e/v7x (packed EUP); f32 tanh on v5e and older / f32 path."""
    if np.dtype(mm_dtype) == np.dtype(jnp.float32):
        return jnp.float32
    try:
        kind = jax.devices()[0].device_kind.lower()
    except Exception:
        return jnp.float32
    if any(tag in kind for tag in ("v2", "v3", "v4", "v5")):
        return jnp.float32
    return jnp.bfloat16


# ----------------------------------------------------------------------------
# Kernel factory: one batch tile (tm lanes) through the whole MLP, walked in
# `chunk`-lane pieces so intermediates stay in vregs.
#   x_ref  : (tm, input_size)      batch-major x tile (possibly ragged)
#   w1_ref : (hidden, input_size)  scale-folded fc1 weight   (mm_dtype)
#   b1_ref : (hidden, 1)           scale-folded fc1 bias col  (f32)
#   w2_ref : (hidden, hidden)      scale-folded fc2 weight   (mm_dtype)
#   b2_ref : (hidden, 1)           scale-folded fc2 bias col  (f32)
#   w3_ref : (hidden, 1)           fc3 weight column          (f32)
#   b3_ref : (1, 1) in SMEM        fc3 bias scalar            (f32)
#   o_ref  : (1, tm)               lane-dense output row      (f32)
# ----------------------------------------------------------------------------
def _make_mlp_kernel(chunk, n_chunks, mm_dtype, act_dtype):
    def kernel(x_ref, w1_ref, b1_ref, w2_ref, b2_ref, w3_ref, b3_ref, o_ref):
        # Tiny constant operands: load once per tile, hoisted out of the loop.
        w1 = w1_ref[...]                    # (hid, in)   mm_dtype
        w2 = w2_ref[...]                    # (hid, hid)  mm_dtype
        b1 = b1_ref[...]                    # (hid, 1)    f32
        b2 = b2_ref[...]                    # (hid, 1)    f32
        w3 = w3_ref[...]                    # (hid, 1)    f32
        b3 = b3_ref[0, 0]                   # scalar      f32 (SMEM)

        def body(c, carry):
            off = pl.multiple_of(c * chunk, chunk)
            # Batch-major slab -> batch-on-lanes via an in-kernel XLU transpose.
            xc = x_ref[pl.ds(off, chunk), :]                 # (chunk, in)
            xt = xc.T.astype(mm_dtype)                       # (in, chunk)

            # fc1 (+ folded n*a) -> tanh.  f32 accumulation on the MXU.
            h1 = jnp.dot(w1, xt, preferred_element_type=jnp.float32) + b1
            h1 = jnp.tanh(h1.astype(act_dtype))              # (hid, chunk)

            # fc2 (+ folded n*b) -> tanh.
            h2 = jnp.dot(w2, h1.astype(mm_dtype),
                         preferred_element_type=jnp.float32) + b2
            h2 = jnp.tanh(h2.astype(act_dtype))              # (hid, chunk)

            # fc3 (hidden -> 1): VPU multiply + sublane (XLU) reduce in f32;
            # result is already lane-dense (1, chunk).
            out = jnp.sum(w3 * h2.astype(jnp.float32),
                          axis=0, keepdims=True) + b3
            o_ref[:, pl.ds(off, chunk)] = out.astype(o_ref.dtype)
            return carry

        lax.fori_loop(0, n_chunks, body, 0, unroll=True)

    return kernel


# ----------------------------------------------------------------------------
# Parameter preparation (one-time, offline): fold n*a / n*b into fc1 / fc2.
# Raw params use torch layouts:
#   w1:(hid,in) b1:(hid,) a:(1,hid) w2:(hid,hid) b2:(hid,) b:(1,hid)
#   w3:(1,hid)  b3:(1,)
# `matmul_dtype=jnp.bfloat16` (default) halves weight bytes and avoids f32
# MXU emulation; biases / accumulation / fc3 reduce stay f32.  Use
# matmul_dtype=jnp.float32 for exact agreement with the torch module.
# ----------------------------------------------------------------------------
def prepare_params(raw_params, matmul_dtype=jnp.bfloat16):
    w1, b1, a, w2, b2, bvec, w3, b3 = raw_params
    s1 = (N_CONST * a).reshape(-1, 1)                   # (hid, 1)
    s2 = (N_CONST * bvec).reshape(-1, 1)                # (hid, 1)
    w1_eff = (s1 * w1).astype(matmul_dtype)             # (hid, in)
    b1_eff = (s1 * b1.reshape(-1, 1)).astype(jnp.float32)
    w2_eff = (s2 * w2).astype(matmul_dtype)             # (hid, hid)
    b2_eff = (s2 * b2.reshape(-1, 1)).astype(jnp.float32)
    w3_eff = w3.reshape(-1, 1).astype(jnp.float32)      # (hid, 1)
    b3_eff = b3.reshape(1, 1).astype(jnp.float32)       # (1, 1) -> SMEM scalar
    return (w1_eff, b1_eff, w2_eff, b2_eff, w3_eff, b3_eff)


# ----------------------------------------------------------------------------
# Wrapper.
# ----------------------------------------------------------------------------
def feedforward_pallas(x, kparams, *, tile_m=2048, act_dtype=None):
    """x: (batch, input_size). Returns (batch, 1) float32."""
    batch, input_size = x.shape
    w1, b1, w2, b2, w3, b3 = kparams
    hidden = w1.shape[0]
    assert w1.shape[1] == input_size

    mm_dtype = w1.dtype
    if act_dtype is None:
        act_dtype = _auto_act_dtype(mm_dtype)

    # --- batch-tile selection ------------------------------------------------
    # Lane-dense tile (multiple of 128), as large as tile_m / batch permit so
    # per-grid-step overhead is amortised; capped so there are >= 2 grid tiles
    # whenever batch > 128, so the "parallel" axis shards over both TCs on v7x.
    padded128 = _round_up(batch, 128)
    tm = min(_round_up(max(tile_m, 128), 128), padded128)
    if padded128 > 128:
        tm = min(tm, _round_up(pl.cdiv(padded128, 2), 128))
    n_tiles = pl.cdiv(batch, tm)

    # Inner lane-chunking keeps (hidden, chunk) intermediates in vregs.
    if tm % 512 == 0 and tm > 512:
        chunk = 512
    elif tm % 256 == 0 and tm > 256:
        chunk = 256
    else:
        chunk = min(tm, 128) if tm % 128 == 0 else tm
    n_chunks = tm // chunk

    kernel = _make_mlp_kernel(chunk, n_chunks, mm_dtype, act_dtype)

    rep = lambda i: (0, 0)  # weights/biases replicated across the batch axis
    # (pipeline_mode=pl.Buffered(1) on these constant-index operands would halve
    #  their double-buffer VMEM; irrelevant at hidden=32, useful at large hidden.)
    # (For extreme tm (>=16K) with f32 data on v5e, set
    #  CompilerParams(vmem_limit_bytes=...) — not needed at these sizes.)

    out = pl.pallas_call(
        kernel,
        out_shape=jax.ShapeDtypeStruct((1, batch), jnp.float32),
        grid_spec=pltpu.PrefetchScalarGridSpec(
            num_scalar_prefetch=0,
            grid=(n_tiles,),
            in_specs=[
                pl.BlockSpec((tm, input_size), lambda i: (i, 0)),   # x tile (ragged ok)
                pl.BlockSpec((hidden, input_size), rep),            # W1_eff
                pl.BlockSpec((hidden, 1), rep),                     # b1_eff
                pl.BlockSpec((hidden, hidden), rep),                # W2_eff
                pl.BlockSpec((hidden, 1), rep),                     # b2_eff
                pl.BlockSpec((hidden, 1), rep),                     # w3 column
                pl.BlockSpec(memory_space=pltpu.MemorySpace.SMEM),  # b3 scalar
            ],
            out_specs=pl.BlockSpec((1, tm), lambda i: (0, i)),      # lane-dense row
        ),
        compiler_params=pltpu.CompilerParams(
            dimension_semantics=("parallel",)),
    )(x, w1, b1, w2, b2, w3, b3)

    return out.reshape(batch, 1)


# ----------------------------------------------------------------------------
# Raw (torch-layout) synthetic parameters + pure-JAX reference.
# ----------------------------------------------------------------------------
def init_raw_params(key, input_size, hidden_size):
    k1, k2, k3, k4, k5, k6 = jax.random.split(key, 6)
    scale = 0.1
    w1 = scale * jax.random.normal(k1, (hidden_size, input_size), jnp.float32)
    b1 = scale * jax.random.normal(k2, (hidden_size,), jnp.float32)
    w2 = scale * jax.random.normal(k3, (hidden_size, hidden_size), jnp.float32)
    b2 = scale * jax.random.normal(k4, (hidden_size,), jnp.float32)
    w3 = scale * jax.random.normal(k5, (1, hidden_size), jnp.float32)
    b3 = scale * jax.random.normal(k6, (1,), jnp.float32)
    a = jnp.ones((1, hidden_size), jnp.float32) / N_CONST
    bvec = jnp.ones((1, hidden_size), jnp.float32) / N_CONST
    # TODO(synk): `Wa`, adapt() and the Adam optimizer are not part of forward().
    return (w1, b1, a, w2, b2, bvec, w3, b3)


def feedforward_ref(x, raw_params):
    """Pure-JAX reference matching the torch forward semantics exactly."""
    w1, b1, a, w2, b2, bvec, w3, b3 = raw_params
    h1 = jnp.tanh(N_CONST * a * (x @ w1.T + b1))
    h2 = jnp.tanh(N_CONST * bvec * (h1 @ w2.T + b2))
    return h2 @ w3.T + b3


if __name__ == "__main__":
    input_size = 16     # e.g. (x, t, ...) PINN feature inputs
    hidden_size = 32

    key = jax.random.PRNGKey(0)
    kx, kp, kx2 = jax.random.split(key, 3)
    raw_params = init_raw_params(kp, input_size, hidden_size)

    # ---- (1) exact path (f32 matmuls / f32 tanh), tiny batch -----------------
    batch = 16
    x = jax.random.normal(kx, (batch, input_size), jnp.float32)
    ref = feedforward_ref(x, raw_params)

    kparams_f32 = prepare_params(raw_params, matmul_dtype=jnp.float32)
    out_f32 = jax.block_until_ready(
        feedforward_pallas(x, kparams_f32, act_dtype=jnp.float32))
    assert out_f32.shape == (batch, 1)
    assert jnp.allclose(out_f32, ref, atol=1e-5, rtol=1e-5), (
        f"f32 path max abs err {jnp.max(jnp.abs(out_f32 - ref))}")

    # ---- (2) fast path (bf16 matmuls, bf16 tanh on v6e/v7x) ------------------
    kparams_fast = prepare_params(raw_params)            # bf16 weights (default)
    out_fast = jax.block_until_ready(feedforward_pallas(x, kparams_fast))
    assert jnp.allclose(out_fast, ref, atol=2e-2, rtol=2e-2), (
        f"bf16 path max abs err {jnp.max(jnp.abs(out_fast - ref))}")

    # ---- (3) multi-tile + ragged-tail path (exercises >=2 grid tiles) --------
    batch2 = 300
    x2 = jax.random.normal(kx2, (batch2, input_size), jnp.float32)
    ref2 = feedforward_ref(x2, raw_params)
    out2 = jax.block_until_ready(
        feedforward_pallas(x2, kparams_f32, act_dtype=jnp.float32))
    assert out2.shape == (batch2, 1)
    assert jnp.allclose(out2, ref2, atol=1e-5, rtol=1e-5), (
        f"ragged path max abs err {jnp.max(jnp.abs(out2 - ref2))}")

    print("KERNEL_OK")
</pallas_src>

<mosaic_0001>
module attributes {stable_mosaic.version = 11 : i64} {
  func.func @kernel(%arg0: i32, %arg1: memref<128x16xf32, #tpu.memory_space<vmem>>, %arg2: memref<32x16xf32, #tpu.memory_space<vmem>>, %arg3: memref<32x1xf32, #tpu.memory_space<vmem>>, %arg4: memref<32x32xf32, #tpu.memory_space<vmem>>, %arg5: memref<32x1xf32, #tpu.memory_space<vmem>>, %arg6: memref<32x1xf32, #tpu.memory_space<vmem>>, %arg7: memref<1x1xf32, #tpu.memory_space<smem>>, %arg8: memref<1x128xf32, #tpu.memory_space<vmem>>) attributes {dimension_semantics = [#tpu.dimension_semantics<parallel>], iteration_bounds = array<i64: 1>, scalar_prefetch = 0 : i64, scratch_operands = 0 : i64, tpu.core_type = #tpu.core_type<tc>, window_params = [{transform_indices = @transform_0, window_bounds = array<i64: 128, 16>}, {pipeline_mode = #tpu.pipeline_mode<synchronous>, transform_indices = @transform_1, window_bounds = array<i64: 32, 16>}, {pipeline_mode = #tpu.pipeline_mode<synchronous>, transform_indices = @transform_2, window_bounds = array<i64: 32, 1>}, {pipeline_mode = #tpu.pipeline_mode<synchronous>, transform_indices = @transform_3, window_bounds = array<i64: 32, 32>}, {pipeline_mode = #tpu.pipeline_mode<synchronous>, transform_indices = @transform_4, window_bounds = array<i64: 32, 1>}, {pipeline_mode = #tpu.pipeline_mode<synchronous>, transform_indices = @transform_5, window_bounds = array<i64: 32, 1>}, {transform_indices = @transform_6, window_bounds = array<i64: 1, 1>}, {transform_indices = @transform_7, window_bounds = array<i64: 1, 128>}]} {
    %c0 = arith.constant 0 : index
    %c0_0 = arith.constant 0 : index
    %0 = vector.load %arg2[%c0, %c0_0] : memref<32x16xf32, #tpu.memory_space<vmem>>, vector<32x16xf32>
    %c0_1 = arith.constant 0 : index
    %c0_2 = arith.constant 0 : index
    %1 = vector.load %arg4[%c0_1, %c0_2] : memref<32x32xf32, #tpu.memory_space<vmem>>, vector<32x32xf32>
    %c0_3 = arith.constant 0 : index
    %c0_4 = arith.constant 0 : index
    %2 = vector.load %arg3[%c0_3, %c0_4] : memref<32x1xf32, #tpu.memory_space<vmem>>, vector<32x1xf32>
    %c0_5 = arith.constant 0 : index
    %c0_6 = arith.constant 0 : index
    %3 = vector.load %arg5[%c0_5, %c0_6] : memref<32x1xf32, #tpu.memory_space<vmem>>, vector<32x1xf32>
    %c0_7 = arith.constant 0 : index
    %c0_8 = arith.constant 0 : index
    %4 = vector.load %arg6[%c0_7, %c0_8] : memref<32x1xf32, #tpu.memory_space<vmem>>, vector<32x1xf32>
    %c0_9 = arith.constant 0 : index
    %c0_10 = arith.constant 0 : index
    %5 = memref.load %arg7[%c0_9, %c0_10] : memref<1x1xf32, #tpu.memory_space<smem>>
    %c0_i32 = arith.constant 0 : i32
    %c128_i32 = arith.constant 128 : i32
    %6 = arith.muli %c0_i32, %c128_i32 : i32
    %7 = tpu.assume_multiple %6, 128 : i32
    %8 = arith.index_cast %7 : i32 to index
    %c0_11 = arith.constant 0 : index
    %9 = vector.load %arg1[%8, %c0_11] : memref<128x16xf32, #tpu.memory_space<vmem>>, vector<128x16xf32>
    %10 = tpu.transpose %9, [1, 0] : vector<128x16xf32> -> vector<16x128xf32>
    %cst = arith.constant dense<0.000000e+00> : vector<32x128xf32>
    %11 = tpu.matmul %0, %10, %cst {dimension_numbers = #tpu.dot_dimension_numbers<[1], [0], [0], [1], [0, 0, 1, 1], [], []>} : vector<32x16xf32>, vector<16x128xf32>, vector<32x128xf32> -> vector<32x128xf32>
    %12 = vector.broadcast %2 : vector<32x1xf32> to vector<32x128xf32>
    %13 = arith.addf %11, %12 : vector<32x128xf32>
    %14 = math.tanh %13 : vector<32x128xf32>
    %cst_12 = arith.constant dense<0.000000e+00> : vector<32x128xf32>
    %15 = tpu.matmul %1, %14, %cst_12 {dimension_numbers = #tpu.dot_dimension_numbers<[1], [0], [0], [1], [0, 0, 1, 1], [], []>} : vector<32x32xf32>, vector<32x128xf32>, vector<32x128xf32> -> vector<32x128xf32>
    %16 = vector.broadcast %3 : vector<32x1xf32> to vector<32x128xf32>
    %17 = arith.addf %15, %16 : vector<32x128xf32>
    %18 = math.tanh %17 : vector<32x128xf32>
    %19 = vector.broadcast %4 : vector<32x1xf32> to vector<32x128xf32>
    %20 = arith.mulf %19, %18 : vector<32x128xf32>
    %cst_13 = arith.constant dense<0.000000e+00> : vector<128xf32>
    %21 = vector.multi_reduction <add>, %20, %cst_13 [0] : vector<32x128xf32> to vector<128xf32>
    %22 = vector.shape_cast %21 : vector<128xf32> to vector<1x128xf32>
    %23 = vector.broadcast %5 : f32 to vector<1x128xf32>
    %24 = arith.addf %22, %23 : vector<1x128xf32>
    %c0_14 = arith.constant 0 : index
    %25 = arith.index_cast %7 : i32 to index
    %26 = vector.load %arg8[%c0_14, %25] : memref<1x128xf32, #tpu.memory_space<vmem>>, vector<1x128xf32>
    tpu.vector_store %arg8[%c0_14, %25], %24 {strides = array<i32>} : memref<1x128xf32, #tpu.memory_space<vmem>>, vector<1x128xf32>,
    %c1_i32 = arith.constant 1 : i32
    return
  }
  func.func @transform_0(%arg0: i32) -> (i32, i32) {
    %c0_i32 = arith.constant 0 : i32
    %c0_i32_0 = arith.constant 0 : i32
    return %arg0, %c0_i32 : i32, i32
  }
  func.func @transform_1(%arg0: i32) -> (i32, i32) {
    %c0_i32 = arith.constant 0 : i32
    %c0_i32_0 = arith.constant 0 : i32
    %c0_i32_1 = arith.constant 0 : i32
    return %c0_i32, %c0_i32_0 : i32, i32
  }
  func.func @transform_2(%arg0: i32) -> (i32, i32) {
    %c0_i32 = arith.constant 0 : i32
    %c0_i32_0 = arith.constant 0 : i32
    %c0_i32_1 = arith.constant 0 : i32
    return %c0_i32, %c0_i32_0 : i32, i32
  }
  func.func @transform_3(%arg0: i32) -> (i32, i32) {
    %c0_i32 = arith.constant 0 : i32
    %c0_i32_0 = arith.constant 0 : i32
    %c0_i32_1 = arith.constant 0 : i32
    return %c0_i32, %c0_i32_0 : i32, i32
  }
  func.func @transform_4(%arg0: i32) -> (i32, i32) {
    %c0_i32 = arith.constant 0 : i32
    %c0_i32_0 = arith.constant 0 : i32
    %c0_i32_1 = arith.constant 0 : i32
    return %c0_i32, %c0_i32_0 : i32, i32
  }
  func.func @transform_5(%arg0: i32) -> (i32, i32) {
    %c0_i32 = arith.constant 0 : i32
    %c0_i32_0 = arith.constant 0 : i32
    %c0_i32_1 = arith.constant 0 : i32
    return %c0_i32, %c0_i32_0 : i32, i32
  }
  func.func @transform_6(%arg0: i32) -> (i32, i32) {
    %c0_i32 = arith.constant 0 : i32
    %c0_i32_0 = arith.constant 0 : i32
    %c0_i32_1 = arith.constant 0 : i32
    return %c0_i32, %c0_i32_0 : i32, i32
  }
  func.func @transform_7(%arg0: i32) -> (i32, i32) {
    %c0_i32 = arith.constant 0 : i32
    %c0_i32_0 = arith.constant 0 : i32
    return %c0_i32, %arg0 : i32, i32
  }
}

</mosaic_0001>

<llo_original>
// kernel: tpu_custom_call.1
$region0: #{tpu_custom_call.1}
  #allocation0 [shape = 'u32[]', space=smem, size = 0x4, offset = 0x4, fixed_abs, tag = 'smem constant byte address 0x4 - core index']
  #allocation1 [shape = 'u32[144,128]{1,0:T(1,128)}', space=vmem, size = 0x12000, scoped, tag = 'internal scratch']
  #allocation2 [shape = 'f32[1,1]{1,0:T(1,128)S(6)}', space=smem, size = 0x200, scoped, tag = 'scoped memory for tpu_custom_call.1']
  %s0 = inlined_call_operand.vmem [shape: f32[16,16], index: 0, kind: input, shape index: {}]
  %s1 = inlined_call_operand.vmem [shape: f32[32,16], index: 1, kind: input, shape index: {}]
  %s2 = inlined_call_operand.vmem [shape: f32[32,1], index: 2, kind: input, shape index: {}]
  %s3 = inlined_call_operand.vmem [shape: f32[32,32], index: 3, kind: input, shape index: {}]
  %s4 = inlined_call_operand.vmem [shape: f32[32,1], index: 4, kind: input, shape index: {}]
  %s5 = inlined_call_operand.vmem [shape: f32[32,1], index: 5, kind: input, shape index: {}]
  %s6 = inlined_call_operand.<no memory space> [shape: f32[1,1], index: 6, kind: input, shape index: {}]
  %s7 = inlined_call_operand.hbm [shape: f32[1,16], index: 7, kind: output, shape index: {}]
  %s8 = sld [smem:[#allocation0]]
  $region38: #{tpu_custom_call.1} parent=0
    _
  %s10 = ssub.s32 1, %s8
  %s11 = scalar_select 0, %s10, %s8
  %12 = sst [smem:[#allocation2]] %s6
  $region1: #{tpu_custom_call.1} parent=0
    #allocation3 [shape = 'u8[512]{0}', space=vmem, size = 0x400, scoped, tag = 'output window, operand 0, single buffered']
    #allocation4 [shape = 's32[1]{0}', space=sflag, size = 0x4, scoped, tag = 'scoped memory for tpu_custom_call.1']
    %13 = vsyncpa [#allocation4], 0
    // Predicated region
    $region2: #{tpu_custom_call.1} parent=1 // pred_check
      _
    $region3: #{tpu_custom_call.1} parent=1 // pred_check_branch
      %15 = sbr.rel (0) target = $region5
    $region4: #{tpu_custom_call.1} parent=1 // pred_region
      _
    $region5: #{tpu_custom_call.1} parent=1 // pred_fallthru
      _
    // Predicated region
    $region6: #{tpu_custom_call.1} parent=1 // pred_check
      _
    $region7: #{tpu_custom_call.1} parent=1 // pred_check_branch
      %17 = sbr.rel (0) target = $region9
    $region8: #{tpu_custom_call.1} parent=1 // pred_region
      _
    $region9: #{tpu_custom_call.1} parent=1 // pred_fallthru
      _
    // Predicated region
    $region10: #{tpu_custom_call.1} parent=1 // pred_check
      _
    $region11: #{tpu_custom_call.1} parent=1 // pred_check_branch
      %19 = sbr.rel (0) target = $region13
    $region12: #{tpu_custom_call.1} parent=1 // pred_region
      _
    $region13: #{tpu_custom_call.1} parent=1 // pred_fallthru
      _
    // Predicated region
    $region14: #{tpu_custom_call.1} parent=1 // pred_check
      _
    $region15: #{tpu_custom_call.1} parent=1 // pred_check_branch
      %21 = sbr.rel (0) target = $region17
    $region16: #{tpu_custom_call.1} parent=1 // pred_region
      _
    $region17: #{tpu_custom_call.1} parent=1 // pred_fallthru
      _
    // Predicated region
    $region18: #{tpu_custom_call.1} parent=1 // pred_check
      _
    $region19: #{tpu_custom_call.1} parent=1 // pred_check_branch
      %23 = sbr.rel (0) target = $region21
    $region20: #{tpu_custom_call.1} parent=1 // pred_region
      _
    $region21: #{tpu_custom_call.1} parent=1 // pred_fallthru
      _
    // Predicated region
    $region22: #{tpu_custom_call.1} parent=1 // pred_check
      _
    $region23: #{tpu_custom_call.1} parent=1 // pred_check_branch
      %25 = sbr.rel (0) target = $region25
    $region24: #{tpu_custom_call.1} parent=1 // pred_region
      _
    $region25: #{tpu_custom_call.1} parent=1 // pred_fallthru
      _
    // Predicated region
    $region26: #{tpu_custom_call.1} parent=1 // pred_check
      _
    $region27: #{tpu_custom_call.1} parent=1 // pred_check_branch
      %27 = sbr.rel (0) target = $region29
    $region28: #{tpu_custom_call.1} parent=1 // pred_region
      _
    $region29: #{tpu_custom_call.1} parent=1 // pred_fallthru
      _
    %v28 = vld [vmem:[%s1] sm:$0xff]
    %v29 = vld [vmem:[%s1 + $0x8] sm:$0xff]
    %v30 = vld [vmem:[%s1 + $0x10] sm:$0xff]
    %v31 = vld [vmem:[%s1 + $0x18] sm:$0xff]
    %v32 = vld [vmem:[%s3] sm:$0xff]
    %v33 = vld [vmem:[%s3 + $0x8] sm:$0xff]
    %v34 = vld [vmem:[%s3 + $0x10] sm:$0xff]
    %v35 = vld [vmem:[%s3 + $0x18] sm:$0xff]
    %v36 = vld [vmem:[%s2] sm:$0xff]
    %v37 = vld [vmem:[%s2 + $0x8] sm:$0xff]
    %v38 = vld [vmem:[%s2 + $0x10] sm:$0xff]
    %v39 = vld [vmem:[%s2 + $0x18] sm:$0xff]
    %v40 = vld [vmem:[%s4] sm:$0xff]
    %v41 = vld [vmem:[%s4 + $0x8] sm:$0xff]
    %v42 = vld [vmem:[%s4 + $0x10] sm:$0xff]
    %v43 = vld [vmem:[%s4 + $0x18] sm:$0xff]
    %v44 = vld [vmem:[%s5] sm:$0xff]
    %v45 = vld [vmem:[%s5 + $0x8] sm:$0xff]
    %v46 = vld [vmem:[%s5 + $0x10] sm:$0xff]
    %v47 = vld [vmem:[%s5 + $0x18] sm:$0xff]
    %s48 = sld [smem:[#allocation2]]
    %v49 = vld [vmem:[%s0] sm:$0xff]
    %v50 = vld [vmem:[%s0 + $0x8] sm:$0xff]
    %v51 = vld [vmem:[%s0 + $0x10] sm:$0xff]
    %v52 = vld [vmem:[%s0 + $0x18] sm:$0xff]
    %v53 = vld [vmem:[%s0 + $0x20] sm:$0xff]
    %v54 = vld [vmem:[%s0 + $0x28] sm:$0xff]
    %v55 = vld [vmem:[%s0 + $0x30] sm:$0xff]
    %v56 = vld [vmem:[%s0 + $0x38] sm:$0xff]
    %v57 = vld [vmem:[%s0 + $0x40] sm:$0xff]
    %v58 = vld [vmem:[%s0 + $0x48] sm:$0xff]
    %v59 = vld [vmem:[%s0 + $0x50] sm:$0xff]
    %v60 = vld [vmem:[%s0 + $0x58] sm:$0xff]
    %v61 = vld [vmem:[%s0 + $0x60] sm:$0xff]
    %v62 = vld [vmem:[%s0 + $0x68] sm:$0xff]
    %v63 = vld [vmem:[%s0 + $0x70] sm:$0xff]
    %v64 = vld [vmem:[%s0 + $0x78] sm:$0xff]
    %66 = vset.pattern.permute.xlu0 0
    %67 = vperm.xlu0 %66, %v36
    %v68 = vpop.permute.xlu0 %67
    %71 = vset.pattern.permute.xlu0 0
    %72 = vperm.xlu0 %71, %v37
    %v73 = vpop.permute.xlu0 %72
    %76 = vset.pattern.permute.xlu0 0
    %77 = vperm.xlu0 %76, %v38
    %v78 = vpop.permute.xlu0 %77
    %81 = vset.pattern.permute.xlu0 0
    %82 = vperm.xlu0 %81, %v39
    %v83 = vpop.permute.xlu0 %82
    %vm85 = vcmask 130048
    %v87 = vsel %vm85, %v28, 0
    %v90 = vsel %vm85, %v29, 0
    %v93 = vsel %vm85, %v30, 0
    %v96 = vsel %vm85, %v31, 0
    %v99 = vsel %vm85, %v49, 0
    %v102 = vsel %vm85, %v50, 0
    %v105 = vsel %vm85, %v51, 0
    %v108 = vsel %vm85, %v52, 0
    %v111 = vsel %vm85, %v53, 0
    %v114 = vsel %vm85, %v54, 0
    %v117 = vsel %vm85, %v55, 0
    %v120 = vsel %vm85, %v56, 0
    %v123 = vsel %vm85, %v57, 0
    %v126 = vsel %vm85, %v58, 0
    %v129 = vsel %vm85, %v59, 0
    %v132 = vsel %vm85, %v60, 0
    %v135 = vsel %vm85, %v61, 0
    %v138 = vsel %vm85, %v62, 0
    %v141 = vsel %vm85, %v63, 0
    %v144 = vsel %vm85, %v64, 0
    %146 = vmatprep.subr.mxu0 0.0
    %147 = vmatpush1.xpose.msra.mxu0 %v99
    %148 = vmatprep.subr.mxu0 0.0
    %149 = vmatpush1.xpose.msra.mxu0 %v102
    %150 = vmatprep.subr.mxu0 0.0
    %151 = vmatpush1.xpose.msra.mxu0 %v105
    %152 = vmatprep.subr.mxu0 0.0
    %153 = vmatpush1.xpose.msra.mxu0 %v108
    %154 = vmatprep.subr.mxu0 0.0
    %155 = vmatpush1.xpose.msra.mxu0 %v111
    %156 = vmatprep.subr.mxu0 0.0
    %157 = vmatpush1.xpose.msra.mxu0 %v114
    %158 = vmatprep.subr.mxu0 0.0
    %159 = vmatpush1.xpose.msra.mxu0 %v117
    %160 = vmatprep.subr.mxu0 0.0
    %161 = vmatpush1.xpose.msra.mxu0 %v120
    %162 = vmatprep.subr.mxu0 0.0
    %163 = vmatpush1.xpose.msra.mxu0 %v123
    %164 = vmatprep.subr.mxu0 0.0
    %165 = vmatpush1.xpose.msra.mxu0 %v126
    %166 = vmatprep.subr.mxu0 0.0
    %167 = vmatpush1.xpose.msra.mxu0 %v129
    %168 = vmatprep.subr.mxu0 0.0
    %169 = vmatpush1.xpose.msra.mxu0 %v132
    %170 = vmatprep.subr.mxu0 0.0
    %171 = vmatpush1.xpose.msra.mxu0 %v135
    %172 = vmatprep.subr.mxu0 0.0
    %173 = vmatpush1.xpose.msra.mxu0 %v138
    %174 = vmatprep.subr.mxu0 0.0
    %175 = vmatpush1.xpose.msra.mxu0 %v141
    %176 = vmatprep.subr.mxu0 0.0
    %177 = vmatpush1.xpose.msra.mxu0 %v144
    %178 = vmatprep.subr.mxu0 0.0
    %179 = vmatpush1.xpose.msra.mxu0 0.0
    %180 = vmatprep.subr.mxu0 0.0
    %181 = vmatpush1.xpose.msra.mxu0 0.0
    %182 = vmatprep.subr.mxu0 0.0
    %183 = vmatpush1.xpose.msra.mxu0 0.0
    %184 = vmatprep.subr.mxu0 0.0
    %185 = vmatpush1.xpose.msra.mxu0 0.0
    %186 = vmatprep.subr.mxu0 0.0
    %187 = vmatpush1.xpose.msra.mxu0 0.0
    %188 = vmatprep.subr.mxu0 0.0
    %189 = vmatpush1.xpose.msra.mxu0 0.0
    %190 = vmatprep.subr.mxu0 0.0
    %191 = vmatpush1.xpose.msra.mxu0 0.0
    %192 = vmatprep.subr.mxu0 0.0
    %193 = vmatpush1.xpose.msra.mxu0 0.0
    %194 = vmatprep.subr.mxu0 0.0
    %195 = vmatpush1.xpose.msra.mxu0 0.0
    %196 = vmatprep.subr.mxu0 0.0
    %197 = vmatpush1.xpose.msra.mxu0 0.0
    %198 = vmatprep.subr.mxu0 0.0
    %199 = vmatpush1.xpose.msra.mxu0 0.0
    %200 = vmatprep.subr.mxu0 0.0
    %201 = vmatpush1.xpose.msra.mxu0 0.0
    %202 = vmatprep.subr.mxu0 0.0
    %203 = vmatpush1.xpose.msra.mxu0 0.0
    %204 = vmatprep.subr.mxu0 0.0
    %205 = vmatpush1.xpose.msra.mxu0 0.0
    %206 = vmatprep.subr.mxu0 0.0
    %207 = vmatpush1.xpose.msra.mxu0 0.0
    %208 = vmatprep.subr.mxu0 0.0
    %209 = vmatpush1.xpose.msra.mxu0 0.0
    %210 = vmatprep.mubr.f32.mxu0 0.0
    %211 = vmatmul.mubr.f32.gmra.mrb[0].mxu0 %v87
    %v212 = vpop.f32.mrb[0].mxu0
    %v213 = vadd.f32 %v68, %v212
    %v214 = vpop.f32.mrb[0].mxu0
    %215 = vmatprep.mubr.f32.mxu0 0.0
    %216 = vmatmul.mubr.f32.gmra.mrb[0].mxu0 %v90
    %v217 = vpop.f32.mrb[0].mxu0
    %v218 = vadd.f32 %v73, %v217
    %v219 = vpop.f32.mrb[0].mxu0
    %220 = vmatprep.mubr.f32.mxu0 0.0
    %221 = vmatmul.mubr.f32.gmra.mrb[0].mxu0 %v93
    %v222 = vpop.f32.mrb[0].mxu0
    %v223 = vadd.f32 %v78, %v222
    %v224 = vpop.f32.mrb[0].mxu0
    %225 = vmatprep.mubr.f32.mxu0 0.0
    %226 = vmatmul.mubr.f32.gmra.mrb[0].mxu0 %v96
    %v227 = vpop.f32.mrb[0].mxu0
    %v228 = vadd.f32 %v83, %v227
    %v229 = vpop.f32.mrb[0].mxu0
    %230 = vdwg.mxu0
    %v231 = vtanh.pop %v213
    %v232 = vtanh.pop %v218
    %v233 = vtanh.pop %v223
    %v234 = vtanh.pop %v228
    %236 = vset.pattern.permute.xlu0 0
    %237 = vperm.xlu0 %236, %v40
    %v238 = vpop.permute.xlu0 %237
    %241 = vset.pattern.permute.xlu0 0
    %242 = vperm.xlu0 %241, %v41
    %v243 = vpop.permute.xlu0 %242
    %246 = vset.pattern.permute.xlu0 0
    %247 = vperm.xlu0 %246, %v42
    %v248 = vpop.permute.xlu0 %247
    %251 = vset.pattern.permute.xlu0 0
    %252 = vperm.xlu0 %251, %v43
    %v253 = vpop.permute.xlu0 %252
    %vm255 = vcmask 261120
    %v257 = vsel %vm255, %v32, 0
    %v260 = vsel %vm255, %v33, 0
    %v263 = vsel %vm255, %v34, 0
    %v266 = vsel %vm255, %v35, 0
    %268 = vmatprep.subr.mxu0 0.0
    %269 = vmatpush1.msra.mxu0 %v231
    %270 = vmatprep.subr.mxu0 0.0
    %271 = vmatpush1.msra.mxu0 %v232
    %272 = vmatprep.subr.mxu0 0.0
    %273 = vmatpush1.msra.mxu0 %v233
    %274 = vmatprep.subr.mxu0 0.0
    %275 = vmatpush1.msra.mxu0 %v234
    %276 = vmatprep.subr.mxu0 0.0
    %277 = vmatpush1.msra.mxu0 0.0
    %278 = vmatprep.subr.mxu0 0.0
    %279 = vmatpush1.msra.mxu0 0.0
    %280 = vmatprep.subr.mxu0 0.0
    %281 = vmatpush1.msra.mxu0 0.0
    %282 = vmatprep.subr.mxu0 0.0
    %283 = vmatpush1.msra.mxu0 0.0
    %284 = vmatprep.subr.mxu0 0.0
    %285 = vmatpush1.msra.mxu0 0.0
    %286 = vmatprep.subr.mxu0 0.0
    %287 = vmatpush1.msra.mxu0 0.0
    %288 = vmatprep.subr.mxu0 0.0
    %289 = vmatpush1.msra.mxu0 0.0
    %290 = vmatprep.subr.mxu0 0.0
    %291 = vmatpush1.msra.mxu0 0.0
    %292 = vmatprep.subr.mxu0 0.0
    %293 = vmatpush1.msra.mxu0 0.0
    %294 = vmatprep.subr.mxu0 0.0
    %295 = vmatpush1.msra.mxu0 0.0
    %296 = vmatprep.subr.mxu0 0.0
    %297 = vmatpush1.msra.mxu0 0.0
    %298 = vmatprep.subr.mxu0 0.0
    %299 = vmatpush1.msra.mxu0 0.0
    %300 = vmatprep.subr.mxu0 0.0
    %301 = vmatpush1.msra.mxu0 0.0
    %302 = vmatprep.subr.mxu0 0.0
    %303 = vmatpush1.msra.mxu0 0.0
    %304 = vmatprep.subr.mxu0 0.0
    %305 = vmatpush1.msra.mxu0 0.0
    %306 = vmatprep.subr.mxu0 0.0
    %307 = vmatpush1.msra.mxu0 0.0
    %308 = vmatprep.subr.mxu0 0.0
    %309 = vmatpush1.msra.mxu0 0.0
    %310 = vmatprep.subr.mxu0 0.0
    %311 = vmatpush1.msra.mxu0 0.0
    %312 = vmatprep.subr.mxu0 0.0
    %313 = vmatpush1.msra.mxu0 0.0
    %314 = vmatprep.subr.mxu0 0.0
    %315 = vmatpush1.msra.mxu0 0.0
    %316 = vmatprep.subr.mxu0 0.0
    %317 = vmatpush1.msra.mxu0 0.0
    %318 = vmatprep.subr.mxu0 0.0
    %319 = vmatpush1.msra.mxu0 0.0
    %320 = vmatprep.subr.mxu0 0.0
    %321 = vmatpush1.msra.mxu0 0.0
    %322 = vmatprep.subr.mxu0 0.0
    %323 = vmatpush1.msra.mxu0 0.0
    %324 = vmatprep.subr.mxu0 0.0
    %325 = vmatpush1.msra.mxu0 0.0
    %326 = vmatprep.subr.mxu0 0.0
    %327 = vmatpush1.msra.mxu0 0.0
    %328 = vmatprep.subr.mxu0 0.0
    %329 = vmatpush1.msra.mxu0 0.0
    %330 = vmatprep.subr.mxu0 0.0
    %331 = vmatpush1.msra.mxu0 0.0
    %332 = vmatprep.mubr.f32.mxu0 0.0
    %333 = vmatmul.mubr.f32.gmra.mrb[0].mxu0 %v257
    %v334 = vpop.f32.mrb[0].mxu0
    %v335 = vadd.f32 %v238, %v334
    %v336 = vpop.f32.mrb[0].mxu0
    %337 = vmatprep.mubr.f32.mxu0 0.0
    %338 = vmatmul.mubr.f32.gmra.mrb[0].mxu0 %v260
    %v339 = vpop.f32.mrb[0].mxu0
    %v340 = vadd.f32 %v243, %v339
    %v341 = vpop.f32.mrb[0].mxu0
    %342 = vmatprep.mubr.f32.mxu0 0.0
    %343 = vmatmul.mubr.f32.gmra.mrb[0].mxu0 %v263
    %v344 = vpop.f32.mrb[0].mxu0
    %v345 = vadd.f32 %v248, %v344
    %v346 = vpop.f32.mrb[0].mxu0
    %347 = vmatprep.mubr.f32.mxu0 0.0
    %348 = vmatmul.mubr.f32.gmra.mrb[0].mxu0 %v266
    %v349 = vpop.f32.mrb[0].mxu0
    %v350 = vadd.f32 %v253, %v349
    %v351 = vpop.f32.mrb[0].mxu0
    %352 = vdwg.mxu0
    %v353 = vtanh.pop %v335
    %v354 = vtanh.pop %v340
    %v355 = vtanh.pop %v345
    %v356 = vtanh.pop %v350
    %358 = vset.pattern.permute.xlu0 0
    %359 = vperm.xlu0 %358, %v44
    %v360 = vpop.permute.xlu0 %359
    %363 = vset.pattern.permute.xlu0 0
    %364 = vperm.xlu0 %363, %v45
    %v365 = vpop.permute.xlu0 %364
    %368 = vset.pattern.permute.xlu0 0
    %369 = vperm.xlu0 %368, %v46
    %v370 = vpop.permute.xlu0 %369
    %373 = vset.pattern.permute.xlu0 0
    %374 = vperm.xlu0 %373, %v47
    %v375 = vpop.permute.xlu0 %374
    %v377 = vmul.f32 %v360, %v353
    %v378 = vmul.f32 %v365, %v354
    %v379 = vmul.f32 %v370, %v355
    %v380 = vmul.f32 %v375, %v356
    %v381 = vadd.f32 %v377, %v378
    %v382 = vadd.f32 %v381, %v379
    %v383 = vadd.f32 %v382, %v380
    %v384 = vrot.slane %v383, 4
    %v385 = vadd.f32 %v383, %v384
    %v386 = vrot.slane %v385, 2
    %v387 = vadd.f32 %v385, %v386
    %v388 = vrot.slane %v387, 1
    %v389 = vadd.f32 %v387, %v388
    %v390 = vstv %s48
    %v391 = vadd.f32 %v389, %v390
    %392 = vst [vmem:[#allocation3] sm:$0x1] %v391
    // Predicated region
    $region30: #{tpu_custom_call.1} parent=1 // pred_check
      _
    $region31: #{tpu_custom_call.1} parent=1 // pred_check_branch
      %394 = sbr.rel (0) target = $region33
    $region32: #{tpu_custom_call.1} parent=1 // pred_region
      %s396 = ssub.s32 16, 16
      %397 = vsyncadd [#allocation4], %s396
      %s399 = sshll.u32 [#allocation3], 4
      %s400 = int_to_ptr.vmem [resolvable:$true] %s399
      %402 = dma.vmem_to_hbm [thread:$0]  %s400, 16, %s7, [#allocation4]
    $region33: #{tpu_custom_call.1} parent=1 // pred_fallthru
      _
    // Predicated region
    $region34: #{tpu_custom_call.1} parent=1 // pred_check
      _
    $region35: #{tpu_custom_call.1} parent=1 // pred_check_branch
      %404 = sbr.rel (0) target = $region37
    $region36: #{tpu_custom_call.1} parent=1 // pred_region
      %405 = dma.done [#allocation4], 16
    $region37: #{tpu_custom_call.1} parent=1 // pred_fallthru
      _
    %406 = vsyncpa [#allocation4], 1

</llo_original>
